<compile_context>
chip_gen: v6e
topology: v6e:2x2x1
jax: 0.10.0
libtpu: 0.0.40
codegen_flags: <defaults>
</compile_context>

<pallas_src>
import functools
import math

import jax
import jax.numpy as jnp
from jax import lax
from jax.experimental import pallas as pl
from jax.experimental.pallas import tpu as pltpu

_VMEM_LIMIT = 32 * 1024 * 1024


def _fit(dim, target, base):
    """Largest tile <= target that is a multiple of `base` and divides `dim`
    (falls back to the full dim, which is always a legal block)."""
    if dim <= target:
        return dim
    t = (target // base) * base
    while t >= base:
        if dim % t == 0:
            return t
        t -= base
    return dim


# ----------------------------------------------------------------------------
# Tiled matmul (bf16 MXU, f32 accumulation in VMEM scratch)
# ----------------------------------------------------------------------------
def _matmul_kernel(x_ref, w_ref, o_ref, acc_ref):
    @pl.when(pl.program_id(2) == 0)
    def _():
        acc_ref[...] = jnp.zeros(acc_ref.shape, jnp.float32)

    acc_ref[...] += jnp.dot(
        x_ref[...].astype(jnp.bfloat16),
        w_ref[...].astype(jnp.bfloat16),
        preferred_element_type=jnp.float32,
    )

    @pl.when(pl.program_id(2) == pl.num_programs(2) - 1)
    def _():
        o_ref[...] = acc_ref[...].astype(o_ref.dtype)


def _linear(x, w_t, out_dtype=None, tm=256, tn=256, tk=512):
    """x: [M, K] @ w_t: [K, N] -> [M, N], tiled + auto-pipelined."""
    M, K = x.shape
    K2, N = w_t.shape
    assert K == K2
    out_dtype = out_dtype if out_dtype is not None else x.dtype
    tm = _fit(M, tm, 8)
    tn = _fit(N, tn, 128)
    tk = _fit(K, tk, 128)
    grid = (M // tm, N // tn, K // tk)
    return pl.pallas_call(
        _matmul_kernel,
        out_shape=jax.ShapeDtypeStruct((M, N), out_dtype),
        grid=grid,
        in_specs=[
            pl.BlockSpec((tm, tk), lambda i, j, k: (i, k)),
            pl.BlockSpec((tk, tn), lambda i, j, k: (k, j)),
        ],
        out_specs=pl.BlockSpec((tm, tn), lambda i, j, k: (i, j)),
        scratch_shapes=[pltpu.VMEM((tm, tn), jnp.float32)],
        compiler_params=pltpu.CompilerParams(
            dimension_semantics=("parallel", "parallel", "arbitrary"),
            vmem_limit_bytes=_VMEM_LIMIT,
        ),
    )(x, w_t)


# ----------------------------------------------------------------------------
# RoPE (rotate_half form), once per element; optional transpose to head-major layout
# ----------------------------------------------------------------------------
def _rope_kernel(x_ref, cos_ref, sin_ref, o_ref, *, half):
    # out = x*cos + rotate_half(x)*sin, with cos = [c,c] and sin = [s,s]:
    #   out[:, :half] = x1*c - x2*s ;  out[:, half:] = x2*c + x1*s
    x = x_ref[0].astype(jnp.float32)          # (ts, D)
    x1 = x[:, :half]
    x2 = x[:, half:]
    c = cos_ref[...]                           # (ts, D/2) f32 (may include 1/sqrt(D))
    s = sin_ref[...]
    out = jnp.concatenate([x1 * c - x2 * s, x2 * c + x1 * s], axis=-1)
    o_ref[...] = out.reshape(o_ref.shape).astype(o_ref.dtype)


def _rope(x_bsd, cos_h, sin_h, n_heads, head_dim, out_dtype, *, to_heads_layout):
    """x_bsd: [B, S, n_heads*head_dim] (projection layout).
       Output: [B, n_heads, S, head_dim] if to_heads_layout else same layout as input."""
    B, S, _ = x_bsd.shape
    half = head_dim // 2
    ts = _fit(S, 512, 8)
    grid = (B, n_heads, S // ts)
    kernel = functools.partial(_rope_kernel, half=half)
    if to_heads_layout:
        out_shape = jax.ShapeDtypeStruct((B, n_heads, S, head_dim), out_dtype)
        out_spec = pl.BlockSpec((1, 1, ts, head_dim), lambda b, h, si: (b, h, si, 0))
    else:
        out_shape = jax.ShapeDtypeStruct(x_bsd.shape, out_dtype)
        out_spec = pl.BlockSpec((1, ts, head_dim), lambda b, h, si: (b, si, h))
    return pl.pallas_call(
        kernel,
        out_shape=out_shape,
        grid=grid,
        in_specs=[
            pl.BlockSpec((1, ts, head_dim), lambda b, h, si: (b, si, h)),
            pl.BlockSpec((ts, half), lambda b, h, si: (si, 0)),
            pl.BlockSpec((ts, half), lambda b, h, si: (si, 0)),
        ],
        out_specs=out_spec,
        compiler_params=pltpu.CompilerParams(
            dimension_semantics=("parallel", "parallel", "parallel"),
            vmem_limit_bytes=_VMEM_LIMIT,
        ),
    )(x_bsd, cos_h, sin_h)


# ----------------------------------------------------------------------------
# Flash-style causal GQA attention (online softmax, KV-tiled, G heads per step)
# ----------------------------------------------------------------------------
def _flash_attn_kernel(q_ref, k_ref, v_ref, o_ref, m_s, l_s, acc_s, *, tq, tkv, G):
    qi = pl.program_id(2)
    ki = pl.program_id(3)
    R = G * tq                              # MXU rows per step (all heads of the group)
    D = acc_s.shape[-1]

    @pl.when(ki == 0)
    def _():
        m_s[...] = jnp.full(m_s.shape, -jnp.inf, dtype=jnp.float32)
        l_s[...] = jnp.zeros(l_s.shape, dtype=jnp.float32)
        acc_s[...] = jnp.zeros(acc_s.shape, dtype=jnp.float32)

    q_start = qi * tq
    k_start = ki * tkv

    # Skip KV blocks that lie entirely above the causal diagonal.
    @pl.when(k_start <= q_start + tq - 1)
    def _():
        q = q_ref[0, 0].reshape(R, D)        # (G*tq, D) bf16, RoPE'd + 1/sqrt(D) folded
        k = k_ref[0]                          # (tkv, D)  bf16, RoPE'd
        v = v_ref[0]                          # (tkv, D)  bf16
        s = lax.dot_general(
            q, k, (((1,), (1,)), ((), ())), preferred_element_type=jnp.float32
        )                                     # (R, tkv) f32
        rows = lax.broadcasted_iota(jnp.int32, (R, tkv), 0)
        cols = lax.broadcasted_iota(jnp.int32, (R, tkv), 1)
        q_pos = q_start + rows % tq           # row = g*tq + q_local
        k_pos = k_start + cols
        s = jnp.where(k_pos <= q_pos, s, jnp.float32(-1e30))

        m_prev = m_s[...]
        m_new = jnp.maximum(m_prev, jnp.max(s, axis=-1, keepdims=True))
        alpha = jnp.exp(m_prev - m_new)
        p = jnp.exp(s - m_new)
        l_s[...] = alpha * l_s[...] + jnp.sum(p, axis=-1, keepdims=True)
        acc_s[...] = alpha * acc_s[...] + jnp.dot(
            p.astype(v.dtype), v, preferred_element_type=jnp.float32
        )
        m_s[...] = m_new

    @pl.when(ki == pl.num_programs(3) - 1)
    def _():
        out = acc_s[...] * pl.reciprocal(l_s[...], approx=True)
        o_ref[0, 0] = out.reshape(G, tq, D).astype(o_ref.dtype)


def _flash_attention(q_bkgsd, k_bsd, v_bsd, *, out_dtype, tq_target=128, tkv_target=256):
    """q_bkgsd: [B, Hkv, G, S, D] (RoPE'd, pre-scaled, bf16)
       k_bsd / v_bsd: [B, S, Hkv*D] (K RoPE'd, bf16)
       returns [B, Hkv, G, S, D] = softmax(QK^T/sqrt(D) + causal) V."""
    B, Hkv, G, S, D = q_bkgsd.shape
    tq = _fit(S, tq_target, 8)
    tkv = _fit(S, tkv_target, 8)
    grid = (B, Hkv, S // tq, S // tkv)
    R = G * tq
    kernel = functools.partial(_flash_attn_kernel, tq=tq, tkv=tkv, G=G)
    return pl.pallas_call(
        kernel,
        out_shape=jax.ShapeDtypeStruct((B, Hkv, G, S, D), out_dtype),
        grid=grid,
        in_specs=[
            pl.BlockSpec((1, 1, G, tq, D), lambda b, kv, qi, ki: (b, kv, 0, qi, 0)),
            pl.BlockSpec((1, tkv, D), lambda b, kv, qi, ki: (b, ki, kv)),
            pl.BlockSpec((1, tkv, D), lambda b, kv, qi, ki: (b, ki, kv)),
        ],
        out_specs=pl.BlockSpec((1, 1, G, tq, D), lambda b, kv, qi, ki: (b, kv, 0, qi, 0)),
        scratch_shapes=[
            pltpu.VMEM((R, 1), jnp.float32),    # running max  m
            pltpu.VMEM((R, 1), jnp.float32),    # running sum  l
            pltpu.VMEM((R, D), jnp.float32),    # output accumulator
        ],
        compiler_params=pltpu.CompilerParams(
            dimension_semantics=("parallel", "parallel", "parallel", "arbitrary"),
            vmem_limit_bytes=_VMEM_LIMIT,
        ),
    )(q_bkgsd, k_bsd, v_bsd)


# ----------------------------------------------------------------------------
# Module wrapper (plain JAX glue)
# ----------------------------------------------------------------------------
class LlamaAttentionPallas:
    def __init__(self, hidden_size, num_heads, num_kv_heads, rope_theta, key):
        assert hidden_size % num_heads == 0
        assert num_heads % num_kv_heads == 0
        self.hidden_size = hidden_size
        self.num_heads = num_heads
        self.head_dim = hidden_size // num_heads
        self.num_key_value_heads = num_kv_heads
        self.num_key_value_groups = num_heads // num_kv_heads
        self.rope_theta = rope_theta

        k1, k2, k3, k4 = jax.random.split(key, 4)
        s = 0.02
        d = self.head_dim
        # nn.Linear(in, out, bias=False) weight is [out, in]; we store transposed [in, out].
        wq_t = jax.random.normal(k1, (hidden_size, num_heads * d)) * s
        wk_t = jax.random.normal(k2, (hidden_size, num_kv_heads * d)) * s
        wv_t = jax.random.normal(k3, (hidden_size, num_kv_heads * d)) * s
        wo_t = jax.random.normal(k4, (num_heads * d, hidden_size)) * s
        # Fused QKV weight (reads the activation matrix from HBM once); bf16 for the MXU.
        self.wqkv_t = jnp.concatenate([wq_t, wk_t, wv_t], axis=1).astype(jnp.bfloat16)
        self.wo_t = wo_t.astype(jnp.bfloat16)

    def _rope_half_tables(self, position_ids):
        # Standard Llama rotate_half RoPE; only the half tables are needed (cos=[c,c], sin=[s,s]).
        d = self.head_dim
        inv_freq = 1.0 / (self.rope_theta ** (jnp.arange(0, d, 2, dtype=jnp.float32) / d))
        freqs = position_ids.astype(jnp.float32)[:, None] * inv_freq[None, :]   # [S, D/2]
        return jnp.cos(freqs), jnp.sin(freqs)

    def __call__(self, hidden_states, position_ids=None):
        B, S, H = hidden_states.shape
        D = self.head_dim
        Hq = self.num_heads
        Hkv = self.num_key_value_heads
        G = self.num_key_value_groups

        if position_ids is None:
            position_ids = jnp.arange(S, dtype=jnp.int32)

        cos_h, sin_h = self._rope_half_tables(position_ids)          # [S, D/2] f32
        inv_scale = jnp.float32(1.0 / math.sqrt(D))
        cos_q = cos_h * inv_scale            # fold 1/sqrt(D) into Q's RoPE tables
        sin_q = sin_h * inv_scale

        # Fused QKV projection: [B*S, H] @ [H, (Hq + 2*Hkv)*D]  ->  bf16
        x2d = hidden_states.reshape(B * S, H)
        qkv = _linear(x2d, self.wqkv_t, out_dtype=jnp.bfloat16)
        q2 = qkv[:, : Hq * D].reshape(B, S, Hq * D)
        k2 = qkv[:, Hq * D:(Hq + Hkv) * D].reshape(B, S, Hkv * D)
        v2 = qkv[:, (Hq + Hkv) * D:].reshape(B, S, Hkv * D)

        # RoPE, exactly once per Q/K element.  Q additionally pre-scaled by 1/sqrt(D) and
        # written head-major (the transpose is folded into the RoPE pass's out BlockSpec).
        q_r = _rope(q2, cos_q, sin_q, Hq, D, jnp.bfloat16, to_heads_layout=True)    # [B,Hq,S,D]
        k_r = _rope(k2, cos_h, sin_h, Hkv, D, jnp.bfloat16, to_heads_layout=False)  # [B,S,Hkv*D]

        # Flash attention over (batch, kv-head, q-tile, kv-tile); G query heads per grid step.
        q_g = q_r.reshape(B, Hkv, G, S, D)
        attn = _flash_attention(q_g, k_r, v2, out_dtype=jnp.bfloat16)               # [B,Hkv,G,S,D]

        attn = attn.reshape(B, Hq, S, D)
        attn = jnp.transpose(attn, (0, 2, 1, 3)).reshape(B * S, Hq * D)

        out = _linear(attn, self.wo_t, out_dtype=hidden_states.dtype).reshape(B, S, H)

        # TODO(synk): IndirectAccessKVCache (past_key_value append / decode path) and
        # attn_weights output are not implemented; prefill-only causal path.
        return out, None, None


# ----------------------------------------------------------------------------
if __name__ == "__main__":
    # Small LlamaConfig-like setup:
    #   hidden_size=256, num_attention_heads=2, num_key_value_heads=1,
    #   head_dim=128, rope_theta=10000.0, batch=2, seq=8.
    B, S, H = 2, 8, 256
    NUM_HEADS, NUM_KV_HEADS = 2, 1
    key = jax.random.PRNGKey(0)
    k_param, k_in = jax.random.split(key)

    attn_mod = LlamaAttentionPallas(H, NUM_HEADS, NUM_KV_HEADS, 10000.0, k_param)
    hidden_states = jax.random.normal(k_in, (B, S, H), dtype=jnp.float32)

    out, attn_weights, past_kv = attn_mod(hidden_states)
    out = jax.block_until_ready(out)
    assert out.shape == (B, S, H)
    assert bool(jnp.isfinite(out).all())
    print("KERNEL_OK")
</pallas_src>

<mosaic_0001>
module attributes {stable_mosaic.version = 11 : i64} {
  func.func @_matmul_kernel(%arg0: i32, %arg1: i32, %arg2: i32, %arg3: memref<16x256xf32, #tpu.memory_space<vmem>>, %arg4: memref<256x256xbf16, #tpu.memory_space<vmem>>, %arg5: memref<16x256xbf16, #tpu.memory_space<vmem>>, %arg6: memref<16x256xf32, #tpu.memory_space<vmem>>) attributes {dimension_semantics = [#tpu.dimension_semantics<parallel>, #tpu.dimension_semantics<parallel>, #tpu.dimension_semantics<arbitrary>], iteration_bounds = array<i64: 1, 2, 1>, scalar_prefetch = 0 : i64, scratch_operands = 1 : i64, tpu.core_type = #tpu.core_type<tc>, window_params = [{transform_indices = @transform_0, window_bounds = array<i64: 16, 256>}, {transform_indices = @transform_1, window_bounds = array<i64: 256, 256>}, {transform_indices = @transform_2, window_bounds = array<i64: 16, 256>}]} {
    %c0_i32 = arith.constant 0 : i32
    %0 = arith.cmpi eq, %arg2, %c0_i32 : i32
    %1 = arith.extui %0 : i1 to i32
    %c0_i32_0 = arith.constant 0 : i32
    %2 = arith.cmpi ne, %1, %c0_i32_0 : i32
    scf.if %2 {
      %cst_10 = arith.constant 0.000000e+00 : f32
      %13 = vector.broadcast %cst_10 : f32 to vector<16x256xf32>
      %c0_11 = arith.constant 0 : index
      %c0_12 = arith.constant 0 : index
      %14 = vector.load %arg6[%c0_11, %c0_12] : memref<16x256xf32, #tpu.memory_space<vmem>>, vector<16x256xf32>
      tpu.vector_store %arg6[%c0_11, %c0_12], %13 {strides = array<i32>} : memref<16x256xf32, #tpu.memory_space<vmem>>, vector<16x256xf32>,
    } else {
    }
    %c0 = arith.constant 0 : index
    %c0_1 = arith.constant 0 : index
    %3 = vector.load %arg6[%c0, %c0_1] : memref<16x256xf32, #tpu.memory_space<vmem>>, vector<16x256xf32>
    %c0_2 = arith.constant 0 : index
    %c0_3 = arith.constant 0 : index
    %4 = vector.load %arg3[%c0_2, %c0_3] : memref<16x256xf32, #tpu.memory_space<vmem>>, vector<16x256xf32>
    %5 = arith.truncf %4 : vector<16x256xf32> to vector<16x256xbf16>
    %c0_4 = arith.constant 0 : index
    %c0_5 = arith.constant 0 : index
    %6 = vector.load %arg4[%c0_4, %c0_5] : memref<256x256xbf16, #tpu.memory_space<vmem>>, vector<256x256xbf16>
    %cst = arith.constant dense<0.000000e+00> : vector<16x256xf32>
    %7 = tpu.matmul %5, %6, %cst {dimension_numbers = #tpu.dot_dimension_numbers<[1], [0], [0], [1], [0, 0, 1, 1], [], []>} : vector<16x256xbf16>, vector<256x256xbf16>, vector<16x256xf32> -> vector<16x256xf32>
    %8 = arith.addf %3, %7 : vector<16x256xf32>
    %c0_6 = arith.constant 0 : index
    %c0_7 = arith.constant 0 : index
    %9 = vector.load %arg6[%c0_6, %c0_7] : memref<16x256xf32, #tpu.memory_space<vmem>>, vector<16x256xf32>
    tpu.vector_store %arg6[%c0_6, %c0_7], %8 {strides = array<i32>} : memref<16x256xf32, #tpu.memory_space<vmem>>, vector<16x256xf32>,
    %c0_i32_8 = arith.constant 0 : i32
    %10 = arith.cmpi eq, %arg2, %c0_i32_8 : i32
    %11 = arith.extui %10 : i1 to i32
    %c0_i32_9 = arith.constant 0 : i32
    %12 = arith.cmpi ne, %11, %c0_i32_9 : i32
    scf.if %12 {
      %c0_10 = arith.constant 0 : index
      %c0_11 = arith.constant 0 : index
      %13 = vector.load %arg6[%c0_10, %c0_11] : memref<16x256xf32, #tpu.memory_space<vmem>>, vector<16x256xf32>
      %14 = arith.truncf %13 : vector<16x256xf32> to vector<16x256xbf16>
      %c0_12 = arith.constant 0 : index
      %c0_13 = arith.constant 0 : index
      %15 = vector.load %arg5[%c0_12, %c0_13] : memref<16x256xbf16, #tpu.memory_space<vmem>>, vector<16x256xbf16>
      tpu.vector_store %arg5[%c0_12, %c0_13], %14 {strides = array<i32>} : memref<16x256xbf16, #tpu.memory_space<vmem>>, vector<16x256xbf16>,
    } else {
    }
    return
  }
  func.func @transform_0(%arg0: i32, %arg1: i32, %arg2: i32) -> (i32, i32) {
    %c0_i32 = arith.constant 0 : i32
    return %arg0, %arg2 : i32, i32
  }
  func.func @transform_1(%arg0: i32, %arg1: i32, %arg2: i32) -> (i32, i32) {
    %c0_i32 = arith.constant 0 : i32
    return %arg2, %arg1 : i32, i32
  }
  func.func @transform_2(%arg0: i32, %arg1: i32, %arg2: i32) -> (i32, i32) {
    %c0_i32 = arith.constant 0 : i32
    return %arg0, %arg1 : i32, i32
  }
}

</mosaic_0001>

<llo_original>
// kernel: tpu_custom_call.1
$region0: #{tpu_custom_call.1}
  #allocation0 [shape = 'u32[]', space=smem, size = 0x4, offset = 0x4, fixed_abs, tag = 'smem constant byte address 0x4 - core index']
  #allocation1 [shape = 'u32[144,128]{1,0:T(1,128)}', space=vmem, size = 0x12000, scoped, tag = 'internal scratch']
  #allocation2 [shape = 'f32[16,256]{1,0:T(8,128)}', space=vmem, size = 0x4000, scoped, tag = 'scratch operand']
  %s0 = inlined_call_operand.hbm [shape: f32[16,256], index: 0, kind: input, shape index: {}]
  %s1 = inlined_call_operand.hbm [shape: bf16[256,512], index: 1, kind: input, shape index: {}]
  %s2 = inlined_call_operand.hbm [shape: bf16[16,512], index: 2, kind: output, shape index: {}]
  %s3 = sld [smem:[#allocation0]]
  $region57: #{tpu_custom_call.1} parent=0
    _
  %s5 = ssub.s32 1, %s3
  %s6 = scalar_select 0, %s5, %s3
  $region1: #{tpu_custom_call.1} parent=0
    #allocation3 [shape = 'u8[16384]{0}', space=vmem, size = 0x4000, scoped, tag = 'input window, operand 0, single buffered']
    #allocation4 [shape = 's32[2]{0}', space=sflag, size = 0x8, scoped, tag = 'scoped memory for tpu_custom_call.1']
    #allocation5 [shape = 's32[2]{0}', space=sflag, size = 0x8, scoped, tag = 'scoped memory for tpu_custom_call.1']
    #allocation6 [shape = 'u8[262144]{0}', space=vmem, size = 0x40000, scoped, tag = 'input window, operand 1']
    #allocation7 [shape = 's32[2]{0}', space=sflag, size = 0x8, scoped, tag = 'scoped memory for tpu_custom_call.1']
    #allocation8 [shape = 'u8[16384]{0}', space=vmem, size = 0x4000, scoped, tag = 'output window, operand 0']
    %7 = vsyncpa [#allocation4], 0
    %8 = vsyncpa [#allocation7], 0
    %s9 = scalar_lea.sflag [#allocation7], 1
    %10 = vsyncpa %s9, 0
    %11 = vsyncpa [#allocation5], 0
    %s12 = scalar_lea.sflag [#allocation5], 1
    %13 = vsyncpa %s12, 0
    loop: start=0, step=1, limit=4
    $region2: #{tpu_custom_call.1} parent=1 // loop_pre_header
      _
    $region3: #{tpu_custom_call.1} parent=1 // loop_header
      %s15 = sphi 0, %s19
      %p16 = scmp.ge.s32.totalorder %s15, 4
      %s22 = sphi 0, %s41
      %s23 = sphi 0, %s37
      %s24 = sphi 0, %s33
      %s25 = sphi 0, %s22
      %s26 = sphi 0, %s23
      %s27 = sphi 0, %s24
      %s28 = sphi 0, %s25
      %s29 = sphi 0, %s26
      %s30 = sphi 0, %s27
      %s46 = sphi 0, %s48
      %s49 = sphi 0, %s46
      %s50 = sphi 0, %s49
      %s66 = sphi 0, %s50
      %s74 = sphi 0, %s76
      %s77 = sphi 0, %s74
      %s78 = sphi 0, %s77
      %s94 = sphi 0, %s78
      %s102 = sphi 0, %s104
      %s105 = sphi 0, %s102
      %s106 = sphi 0, %s105
      %s122 = sphi 0, %s106
    $region4: #{tpu_custom_call.1} parent=1 // loop_header_branch
      %18 = sbr.rel (%p16) target = $region8
    $region5: #{tpu_custom_call.1} parent=1 // loop_body
      %s20 = ssub.s32 %s15, 1
      %s21 = ssub.s32 %s15, 2
      %s31 = sadd.s32 1, %s24
      %p32 = scmp.ge.s32.totalorder %s31, 1
      %s33 = scalar_select %p32, 0, %s31
      %s34 = sadd.s32 1, %s23
      %s35 = scalar_select %p32, %s34, %s23
      %p36 = scmp.ge.s32.totalorder %s35, 2
      %s37 = scalar_select %p36, 0, %s35
      %s38 = sadd.s32 1, %s22
      %s39 = scalar_select %p36, %s38, %s22
      %p40 = scmp.ge.s32.totalorder %s39, 1
      %s41 = scalar_select %p40, 0, %s39
      %s42 = ssub.s32 %s22, %s41
      %s43 = ssub.s32 %s24, %s33
      %s44 = sor.u32 %s42, %s43
      %p45 = scmp.eq.s32.totalorder %s44, 0
      %s47 = sadd.s32 %s46, 1
      %s48 = scalar_select %p45, %s46, %s47
      %p51 = pneg %p45
      %p52 = scmp.eq.s32.totalorder %s15, 1
      %p53 = por %p51, %p52
      %p54 = scmp.ne.s32.totalorder %s46, %s49
      %p55 = scmp.eq.s32.totalorder %s15, 0
      %p56 = por %p54, %p55
      %p57 = scmp.ne.s32.totalorder %s46, %s49
      %p58 = scmp.eq.s32.totalorder %s20, 1
      %p59 = por %p57, %p58
      %p60 = scmp.ne.s32.totalorder %s49, %s50
      %p61 = scmp.eq.s32.totalorder %s20, 0
      %p62 = por %p60, %p61
      %p63 = scmp.ne.s32.totalorder %s49, %s50
      %p64 = scmp.eq.s32.totalorder %s21, 1
      %p65 = por %p63, %p64
      %p67 = scmp.ne.s32.totalorder %s50, %s66
      %p68 = scmp.eq.s32.totalorder %s21, 0
      %p69 = por %p67, %p68
      %s70 = ssub.s32 %s24, %s33
      %s71 = ssub.s32 %s23, %s37
      %s72 = sor.u32 %s70, %s71
      %p73 = scmp.eq.s32.totalorder %s72, 0
      %s75 = sadd.s32 %s74, 1
      %s76 = scalar_select %p73, %s74, %s75
      %p79 = pneg %p73
      %p80 = scmp.eq.s32.totalorder %s15, 1
      %p81 = por %p79, %p80
      %p82 = scmp.ne.s32.totalorder %s74, %s77
      %p83 = scmp.eq.s32.totalorder %s15, 0
      %p84 = por %p82, %p83
      %p85 = scmp.ne.s32.totalorder %s74, %s77
      %p86 = scmp.eq.s32.totalorder %s20, 1
      %p87 = por %p85, %p86
      %p88 = scmp.ne.s32.totalorder %s77, %s78
      %p89 = scmp.eq.s32.totalorder %s20, 0
      %p90 = por %p88, %p89
      %p91 = scmp.ne.s32.totalorder %s77, %s78
      %p92 = scmp.eq.s32.totalorder %s21, 1
      %p93 = por %p91, %p92
      %p95 = scmp.ne.s32.totalorder %s78, %s94
      %p96 = scmp.eq.s32.totalorder %s21, 0
      %p97 = por %p95, %p96
      %s98 = ssub.s32 %s22, %s41
      %s99 = ssub.s32 %s23, %s37
      %s100 = sor.u32 %s98, %s99
      %p101 = scmp.eq.s32.totalorder %s100, 0
      %s103 = sadd.s32 %s102, 1
      %s104 = scalar_select %p101, %s102, %s103
      %p107 = pneg %p101
      %p108 = scmp.eq.s32.totalorder %s15, 1
      %p109 = por %p107, %p108
      %p110 = scmp.ne.s32.totalorder %s102, %s105
      %p111 = scmp.eq.s32.totalorder %s15, 0
      %p112 = por %p110, %p111
      %p113 = scmp.ne.s32.totalorder %s102, %s105
      %p114 = scmp.eq.s32.totalorder %s20, 1
      %p115 = por %p113, %p114
      %p116 = scmp.ne.s32.totalorder %s105, %s106
      %p117 = scmp.eq.s32.totalorder %s20, 0
      %p118 = por %p116, %p117
      %p119 = scmp.ne.s32.totalorder %s105, %s106
      %p120 = scmp.eq.s32.totalorder %s21, 1
      %p121 = por %p119, %p120
      %p123 = scmp.ne.s32.totalorder %s106, %s122
      %p124 = scmp.eq.s32.totalorder %s21, 0
      %p125 = por %p123, %p124
      %p126 = scmp.le.s32.totalorder 1, %s15
      %p127 = scmp.lt.s32.totalorder %s15, 3
      %p128 = pnand %p126, %p127
      %p129 = pneg %p128
      // Predicated region
      $region9: #{tpu_custom_call.1} parent=5 // pred_check
        _
      $region10: #{tpu_custom_call.1} parent=5 // pred_check_branch
        %131 = sbr.rel (%p128) target = $region12
      $region11: #{tpu_custom_call.1} parent=5 // pred_region
        %s132 = ssub.s32 %s15, 1
        // Predicated region
        $region13: #{tpu_custom_call.1} parent=11 // pred_check
          %p133 = pneg %p62
        $region14: #{tpu_custom_call.1} parent=11 // pred_check_branch
          %135 = sbr.rel (%p133) target = $region16
        $region15: #{tpu_custom_call.1} parent=11 // pred_region
          %s136 = smul.u32 2, %s25
          %s137 = smul.u32 2, %s27
          %s139 = ssub.s32 512, 512
          %140 = vsyncadd [#allocation4], %s139
          %s141 = smul.addr %s136, 2
          %s142 = sadd.s32 %s137, %s141
          %s143 = smul.addr %s142, 128
          %s144 = scalar_lea.hbm %s0, %s143
          %s145 = sshll.u32 [#allocation3], 4
          %s146 = int_to_ptr.vmem [resolvable:$true] %s145
          %151 = dma.hbm_to_vmem [thread:$0]  %s144, 512, %s146, [#allocation4], 256, 256, 16
        $region16: #{tpu_custom_call.1} parent=11 // pred_fallthru
          _
      $region12: #{tpu_custom_call.1} parent=5 // pred_fallthru
        _
      %p152 = scmp.lt.s32.totalorder %s15, 2
      // Predicated region
      $region17: #{tpu_custom_call.1} parent=5 // pred_check
        %p153 = pneg %p152
      $region18: #{tpu_custom_call.1} parent=5 // pred_check_branch
        %155 = sbr.rel (%p153) target = $region20
      $region19: #{tpu_custom_call.1} parent=5 // pred_region
        // Predicated region
        $region21: #{tpu_custom_call.1} parent=19 // pred_check
          %p156 = pneg %p84
        $region22: #{tpu_custom_call.1} parent=19 // pred_check_branch
          %158 = sbr.rel (%p156) target = $region24
        $region23: #{tpu_custom_call.1} parent=19 // pred_region
          %s159 = sand.u32 %s74, 1
          %s160 = scalar_lea.sflag [#allocation7], %s159
          %s161 = sand.u32 %s74, 1
          %s162 = smul.addr %s161, 256
          %s163 = scalar_lea.vmem [#allocation6], %s162
          %s164 = smul.u32 32, %s24
          %s165 = smul.u32 2, %s23
          %s167 = ssub.s32 4096, 4096
          %168 = vsyncadd %s160, %s167
          %s169 = smul.addr %s164, 4
          %s170 = sadd.s32 %s165, %s169
          %s171 = smul.addr %s170, 64
          %s172 = scalar_lea.hbm %s1, %s171
          %s173 = sshll.u32 %s163, 4
          %s174 = int_to_ptr.vmem [resolvable:$true] %s173
          %179 = dma.hbm_to_vmem [thread:$0]  %s172, 4096, %s174, %s160, 256, 128, 8
        $region24: #{tpu_custom_call.1} parent=19 // pred_fallthru
          _
      $region20: #{tpu_custom_call.1} parent=5 // pred_fallthru
        _
      %p180 = scmp.le.s32.totalorder 1, %s15
      %p181 = scmp.lt.s32.totalorder %s15, 3
      %p182 = pnand %p180, %p181
      %p183 = pneg %p182
      // Predicated region
      $region25: #{tpu_custom_call.1} parent=5 // pred_check
        _
      $region26: #{tpu_custom_call.1} parent=5 // pred_check_branch
        %185 = sbr.rel (%p182) target = $region28
      $region27: #{tpu_custom_call.1} parent=5 // pred_region
        %s186 = ssub.s32 %s15, 1
        // Predicated region
        $region29: #{tpu_custom_call.1} parent=27 // pred_check
          %p187 = pneg %p62
        $region30: #{tpu_custom_call.1} parent=27 // pred_check_branch
          %189 = sbr.rel (%p187) target = $region32
        $region31: #{tpu_custom_call.1} parent=27 // pred_region
          %190 = dma.done [#allocation4], 512
        $region32: #{tpu_custom_call.1} parent=27 // pred_fallthru
          _
        %s191 = sand.u32 %s77, 1
        %s192 = scalar_lea.sflag [#allocation7], %s191
        %s193 = sand.u32 %s77, 1
        %s194 = smul.addr %s193, 256
        %s195 = scalar_lea.vmem [#allocation6], %s194
        // Predicated region
        $region33: #{tpu_custom_call.1} parent=27 // pred_check
          %p196 = pneg %p90
        $region34: #{tpu_custom_call.1} parent=27 // pred_check_branch
          %198 = sbr.rel (%p196) target = $region36
        $region35: #{tpu_custom_call.1} parent=27 // pred_region
          %199 = dma.done %s192, 4096
        $region36: #{tpu_custom_call.1} parent=27 // pred_fallthru
          _
        %p200 = pneg %p62
        %p201 = pneg %p59
        %s202 = sand.u32 %s77, 1
        %s203 = scalar_lea.sflag [#allocation7], %s202
        %s204 = sand.u32 %s77, 1
        %s205 = smul.addr %s204, 256
        %s206 = scalar_lea.vmem [#allocation6], %s205
        %p207 = pneg %p90
        %p208 = pneg %p87
        %p209 = pneg %p118
        %p210 = pneg %p115
        %s211 = sand.u32 %s105, 1
        %s212 = scalar_lea.sflag [#allocation5], %s211
        %s213 = sand.u32 %s105, 1
        %s214 = smul.addr %s213, 16
        %s215 = scalar_lea.vmem [#allocation8], %s214
        %s216 = smul.u32 2, %s25
        %s217 = smul.u32 2, %s27
        %s218 = smul.u32 32, %s27
        %s219 = smul.u32 2, %s26
        %s220 = smul.u32 2, %s25
        %s221 = smul.u32 2, %s26
        %p222 = scmp.eq.s32.totalorder %s27, 0
        // Predicated region
        $region37: #{tpu_custom_call.1} parent=27 // pred_check
          %p223 = pneg %p222
        $region38: #{tpu_custom_call.1} parent=27 // pred_check_branch
          %225 = sbr.rel (%p223) target = $region40
        $region39: #{tpu_custom_call.1} parent=27 // pred_region
          %226 = vst [vmem:[#allocation2] sm:$0xff] 0.0
          %227 = vst [vmem:[#allocation2 + $0x8] sm:$0xff] 0.0
          %228 = vst [vmem:[#allocation2 + $0x10] sm:$0xff] 0.0
          %229 = vst [vmem:[#allocation2 + $0x18] sm:$0xff] 0.0
        $region40: #{tpu_custom_call.1} parent=27 // pred_fallthru
          _
        %v230 = vld [vmem:[#allocation2] sm:$0xff]
        %v231 = vld [vmem:[#allocation2 + $0x8] sm:$0xff]
        %v232 = vld [vmem:[#allocation2 + $0x10] sm:$0xff]
        %v233 = vld [vmem:[#allocation2 + $0x18] sm:$0xff]
        %v234 = vld [vmem:[#allocation3] sm:$0xff]
        %v235 = vld [vmem:[#allocation3 + $0x8] sm:$0xff]
        %v236 = vld [vmem:[#allocation3 + $0x10] sm:$0xff]
        %v237 = vld [vmem:[#allocation3 + $0x18] sm:$0xff]
        %v238 = vpack.c.bf16 %v236, %v234
        %v239 = vpack.c.bf16 %v237, %v235
        %v240 = vld [vmem:[%s195] sm:$0xff]
        %v241 = vld [vmem:[%s195 + $0x8] sm:$0xff]
        %v242 = vld [vmem:[%s195 + $0x10] sm:$0xff]
        %v243 = vld [vmem:[%s195 + $0x18] sm:$0xff]
        %v244 = vld [vmem:[%s195 + $0x20] sm:$0xff]
        %v245 = vld [vmem:[%s195 + $0x28] sm:$0xff]
        %v246 = vld [vmem:[%s195 + $0x30] sm:$0xff]
        %v247 = vld [vmem:[%s195 + $0x38] sm:$0xff]
        %v248 = vld [vmem:[%s195 + $0x40] sm:$0xff]
        %v249 = vld [vmem:[%s195 + $0x48] sm:$0xff]
        %v250 = vld [vmem:[%s195 + $0x50] sm:$0xff]
        %v251 = vld [vmem:[%s195 + $0x58] sm:$0xff]
        %v252 = vld [vmem:[%s195 + $0x60] sm:$0xff]
        %v253 = vld [vmem:[%s195 + $0x68] sm:$0xff]
        %v254 = vld [vmem:[%s195 + $0x70] sm:$0xff]
        %v255 = vld [vmem:[%s195 + $0x78] sm:$0xff]
        %v256 = vld [vmem:[%s195 + $0x80] sm:$0xff]
        %v257 = vld [vmem:[%s195 + $0x88] sm:$0xff]
        %v258 = vld [vmem:[%s195 + $0x90] sm:$0xff]
        %v259 = vld [vmem:[%s195 + $0x98] sm:$0xff]
        %v260 = vld [vmem:[%s195 + $0xa0] sm:$0xff]
        %v261 = vld [vmem:[%s195 + $0xa8] sm:$0xff]
        %v262 = vld [vmem:[%s195 + $0xb0] sm:$0xff]
        %v263 = vld [vmem:[%s195 + $0xb8] sm:$0xff]
        %v264 = vld [vmem:[%s195 + $0xc0] sm:$0xff]
        %v265 = vld [vmem:[%s195 + $0xc8] sm:$0xff]
        %v266 = vld [vmem:[%s195 + $0xd0] sm:$0xff]
        %v267 = vld [vmem:[%s195 + $0xd8] sm:$0xff]
        %v268 = vld [vmem:[%s195 + $0xe0] sm:$0xff]
        %v269 = vld [vmem:[%s195 + $0xe8] sm:$0xff]
        %v270 = vld [vmem:[%s195 + $0xf0] sm:$0xff]
        %v271 = vld [vmem:[%s195 + $0xf8] sm:$0xff]
        %v304 = vunpack.c.l.b16 %v240
        %v305 = vunpack.c.h.b16 %v240
        %v306 = vunpack.c.l.b16 %v241
        %v307 = vunpack.c.h.b16 %v241
        %v308 = vunpack.c.l.b16 %v242
        %v309 = vunpack.c.h.b16 %v242
        %v310 = vunpack.c.l.b16 %v243
        %v311 = vunpack.c.h.b16 %v243
        %v312 = vunpack.c.l.b16 %v244
        %v313 = vunpack.c.h.b16 %v244
        %v314 = vunpack.c.l.b16 %v245
        %v315 = vunpack.c.h.b16 %v245
        %v316 = vunpack.c.l.b16 %v246
        %v317 = vunpack.c.h.b16 %v246
        %v318 = vunpack.c.l.b16 %v247
        %v319 = vunpack.c.h.b16 %v247
        %v320 = vunpack.c.l.b16 %v248
        %v321 = vunpack.c.h.b16 %v248
        %v322 = vunpack.c.l.b16 %v249
        %v323 = vunpack.c.h.b16 %v249
        %v324 = vunpack.c.l.b16 %v250
        %v325 = vunpack.c.h.b16 %v250
        %v326 = vunpack.c.l.b16 %v251
        %v327 = vunpack.c.h.b16 %v251
        %v328 = vunpack.c.l.b16 %v252
        %v329 = vunpack.c.h.b16 %v252
        %v330 = vunpack.c.l.b16 %v253
        %v331 = vunpack.c.h.b16 %v253
        %v332 = vunpack.c.l.b16 %v254
        %v333 = vunpack.c.h.b16 %v254
        %v334 = vunpack.c.l.b16 %v255
        %v335 = vunpack.c.h.b16 %v255
        %v336 = vunpack.c.l.b16 %v256
        %v337 = vunpack.c.h.b16 %v256
        %v338 = vunpack.c.l.b16 %v257
        %v339 = vunpack.c.h.b16 %v257
        %v340 = vunpack.c.l.b16 %v258
        %v341 = vunpack.c.h.b16 %v258
        %v342 = vunpack.c.l.b16 %v259
        %v343 = vunpack.c.h.b16 %v259
        %v344 = vunpack.c.l.b16 %v260
        %v345 = vunpack.c.h.b16 %v260
        %v346 = vunpack.c.l.b16 %v261
        %v347 = vunpack.c.h.b16 %v261
        %v348 = vunpack.c.l.b16 %v262
        %v349 = vunpack.c.h.b16 %v262
        %v350 = vunpack.c.l.b16 %v263
        %v351 = vunpack.c.h.b16 %v263
        %v352 = vunpack.c.l.b16 %v264
        %v353 = vunpack.c.h.b16 %v264
        %v354 = vunpack.c.l.b16 %v265
        %v355 = vunpack.c.h.b16 %v265
        %v356 = vunpack.c.l.b16 %v266
        %v357 = vunpack.c.h.b16 %v266
        %v358 = vunpack.c.l.b16 %v267
        %v359 = vunpack.c.h.b16 %v267
        %v360 = vunpack.c.l.b16 %v268
        %v361 = vunpack.c.h.b16 %v268
        %v362 = vunpack.c.l.b16 %v269
        %v363 = vunpack.c.h.b16 %v269
        %v364 = vunpack.c.l.b16 %v270
        %v365 = vunpack.c.h.b16 %v270
        %v366 = vunpack.c.l.b16 %v271
        %v367 = vunpack.c.h.b16 %v271
        %v368 = vpack.c.b16 %v306, %v304
        %v369 = vpack.c.b16 %v307, %v305
        %v370 = vpack.c.b16 %v310, %v308
        %v371 = vpack.c.b16 %v311, %v309
        %v372 = vpack.c.b16 %v314, %v312
        %v373 = vpack.c.b16 %v315, %v313
        %v374 = vpack.c.b16 %v318, %v316
        %v375 = vpack.c.b16 %v319, %v317
        %v376 = vpack.c.b16 %v322, %v320
        %v377 = vpack.c.b16 %v323, %v321
        %v378 = vpack.c.b16 %v326, %v324
        %v379 = vpack.c.b16 %v327, %v325
        %v380 = vpack.c.b16 %v330, %v328
        %v381 = vpack.c.b16 %v331, %v329
        %v382 = vpack.c.b16 %v334, %v332
        %v383 = vpack.c.b16 %v335, %v333
        %v384 = vpack.c.b16 %v338, %v336
        %v385 = vpack.c.b16 %v339, %v337
        %v386 = vpack.c.b16 %v342, %v340
        %v387 = vpack.c.b16 %v343, %v341
        %v388 = vpack.c.b16 %v346, %v344
        %v389 = vpack.c.b16 %v347, %v345
        %v390 = vpack.c.b16 %v350, %v348
        %v391 = vpack.c.b16 %v351, %v349
        %v392 = vpack.c.b16 %v354, %v352
        %v393 = vpack.c.b16 %v355, %v353
        %v394 = vpack.c.b16 %v358, %v356
        %v395 = vpack.c.b16 %v359, %v357
        %v396 = vpack.c.b16 %v362, %v360
        %v397 = vpack.c.b16 %v363, %v361
        %v398 = vpack.c.b16 %v366, %v364
        %v399 = vpack.c.b16 %v367, %v365
        %432 = vmatprep.subr.bf16.mxu0 %v383
        %433 = vmatpush1.bf16.msra.mxu0 %v382
        %434 = vmatprep.subr.bf16.mxu0 %v381
        %435 = vmatpush1.bf16.msra.mxu0 %v380
        %436 = vmatprep.subr.bf16.mxu0 %v379
        %437 = vmatpush1.bf16.msra.mxu0 %v378
        %438 = vmatprep.subr.bf16.mxu0 %v377
        %439 = vmatpush1.bf16.msra.mxu0 %v376
        %440 = vmatprep.subr.bf16.mxu0 %v375
        %441 = vmatpush1.bf16.msra.mxu0 %v374
        %442 = vmatprep.subr.bf16.mxu0 %v373
        %443 = vmatpush1.bf16.msra.mxu0 %v372
        %444 = vmatprep.subr.bf16.mxu0 %v371
        %445 = vmatpush1.bf16.msra.mxu0 %v370
        %446 = vmatprep.subr.bf16.mxu0 %v369
        %447 = vmatpush1.bf16.msra.mxu0 %v368
        %448 = vmatprep.subr.bf16.mxu0 %v399
        %449 = vmatpush2.bf16.msra.mxu0 %v398
        %450 = vmatprep.subr.bf16.mxu0 %v397
        %451 = vmatpush2.bf16.msra.mxu0 %v396
        %452 = vmatprep.subr.bf16.mxu0 %v395
        %453 = vmatpush2.bf16.msra.mxu0 %v394
        %454 = vmatprep.subr.bf16.mxu0 %v393
        %455 = vmatpush2.bf16.msra.mxu0 %v392
        %456 = vmatprep.subr.bf16.mxu0 %v391
        %457 = vmatpush2.bf16.msra.mxu0 %v390
        %458 = vmatprep.subr.bf16.mxu0 %v389
        %459 = vmatpush2.bf16.msra.mxu0 %v388
        %460 = vmatprep.subr.bf16.mxu0 %v387
        %461 = vmatpush2.bf16.msra.mxu0 %v386
        %462 = vmatprep.subr.bf16.mxu0 %v385
        %463 = vmatpush2.bf16.msra.mxu0 %v384
        %464 = vmatprep.mubr.bf16.mxu0 %v239
        %465 = vmatmul.mubr.bf16.gmra.mxu0 %v238
        %v466 = vpop.f32.mrf.mxu0
        %v467 = vadd.f32 0.0, %v466
        %v468 = vpop.f32.mrf.mxu0
        %v469 = vadd.f32 0.0, %v468
        %v470 = vpop.f32.mrf.mxu0
        %v471 = vadd.f32 0.0, %v470
        %v472 = vpop.f32.mrf.mxu0
        %v473 = vadd.f32 0.0, %v472
        %474 = vdwg.mxu0
        %v475 = vadd.f32 %v230, %v467
        %v476 = vadd.f32 %v231, %v469
        %v477 = vadd.f32 %v232, %v471
        %v478 = vadd.f32 %v233, %v473
        %479 = vst [vmem:[#allocation2] sm:$0xff] %v475
        %480 = vst [vmem:[#allocation2 + $0x8] sm:$0xff] %v476
        %481 = vst [vmem:[#allocation2 + $0x10] sm:$0xff] %v477
        %482 = vst [vmem:[#allocation2 + $0x18] sm:$0xff] %v478
        // Predicated region
        $region41: #{tpu_custom_call.1} parent=27 // pred_check
          %p483 = pneg %p222
        $region42: #{tpu_custom_call.1} parent=27 // pred_check_branch
          %485 = sbr.rel (%p483) target = $region44
        $region43: #{tpu_custom_call.1} parent=27 // pred_region
          %v486 = vld [vmem:[#allocation2] sm:$0xff]
          %v487 = vld [vmem:[#allocation2 + $0x8] sm:$0xff]
          %v488 = vld [vmem:[#allocation2 + $0x10] sm:$0xff]
          %v489 = vld [vmem:[#allocation2 + $0x18] sm:$0xff]
          %v490 = vpack.c.bf16 %v488, %v486
          %v491 = vpack.c.bf16 %v489, %v487
          %v494 = vunpack.c.l.b16 %v490
          %v495 = vunpack.c.l.b16 %v491
          %v496 = vunpack.c.h.b16 %v490
          %v497 = vunpack.c.h.b16 %v491
          %v498 = vpack.c.b16 %v495, %v494
          %v499 = vpack.c.b16 %v497, %v496
          %502 = vst [vmem:[%s215] sm:$0xff] %v498
          %503 = vst [vmem:[%s215 + $0x8] sm:$0xff] %v499
        $region44: #{tpu_custom_call.1} parent=27 // pred_fallthru
          _
        %s504 = sand.u32 %s105, 1
        %s505 = scalar_lea.sflag [#allocation5], %s504
        %s506 = sand.u32 %s105, 1
        %s507 = smul.addr %s506, 16
        %s508 = scalar_lea.vmem [#allocation8], %s507
        // Predicated region
        $region45: #{tpu_custom_call.1} parent=27 // pred_check
          %p509 = pneg %p115
        $region46: #{tpu_custom_call.1} parent=27 // pred_check_branch
          %511 = sbr.rel (%p509) target = $region48
        $region47: #{tpu_custom_call.1} parent=27 // pred_region
          %s512 = smul.u32 2, %s25
          %s513 = smul.u32 2, %s26
          %s515 = ssub.s32 256, 256
          %516 = vsyncadd %s505, %s515
          %s517 = smul.addr %s512, 4
          %s518 = sadd.s32 %s513, %s517
          %s519 = smul.addr %s518, 64
          %s520 = scalar_lea.hbm %s2, %s519
          %s521 = sshll.u32 %s508, 4
          %s522 = int_to_ptr.vmem [resolvable:$true] %s521
          %527 = dma.vmem_to_hbm [thread:$0]  %s522, 256, %s520, %s505, 128, 256, 8
        $region48: #{tpu_custom_call.1} parent=27 // pred_fallthru
          _
      $region28: #{tpu_custom_call.1} parent=5 // pred_fallthru
        _
      %p528 = scmp.le.s32.totalorder 2, %s15
      // Predicated region
      $region49: #{tpu_custom_call.1} parent=5 // pred_check
        %p529 = pneg %p528
      $region50: #{tpu_custom_call.1} parent=5 // pred_check_branch
        %531 = sbr.rel (%p529) target = $region52
      $region51: #{tpu_custom_call.1} parent=5 // pred_region
        %s532 = ssub.s32 %s15, 2
        // Predicated region
        $region53: #{tpu_custom_call.1} parent=51 // pred_check
          %p533 = pneg %p121
        $region54: #{tpu_custom_call.1} parent=51 // pred_check_branch
          %535 = sbr.rel (%p533) target = $region56
        $region55: #{tpu_custom_call.1} parent=51 // pred_region
          %s536 = sand.u32 %s106, 1
          %s537 = scalar_lea.sflag [#allocation5], %s536
          %s538 = sand.u32 %s106, 1
          %s539 = smul.addr %s538, 16
          %s540 = scalar_lea.vmem [#allocation8], %s539
          %541 = dma.done %s537, 256
        $region56: #{tpu_custom_call.1} parent=51 // pred_fallthru
          _
      $region52: #{tpu_custom_call.1} parent=5 // pred_fallthru
        _
    $region6: #{tpu_custom_call.1} parent=1 // loop_footer
      %s19 = sadd.s32 1, %s15
    $region7: #{tpu_custom_call.1} parent=1 // loop_footer_branch
      %14 = sbr.rel target = $region3
    $region8: #{tpu_custom_call.1} parent=1 // loop_exit
      _
    %542 = vsyncpa [#allocation4], 1
    %s543 = scalar_lea.sflag [#allocation4], 1
    %544 = vsyncpa %s543, 1
    %545 = vsyncpa [#allocation7], 1
    %s546 = scalar_lea.sflag [#allocation7], 1
    %547 = vsyncpa %s546, 1
    %548 = vsyncpa [#allocation5], 1
    %s549 = scalar_lea.sflag [#allocation5], 1
    %550 = vsyncpa %s549, 1

</llo_original>
